<compile_context>
chip_gen: v6e
topology: v6e:2x2x1
jax: 0.10.0
libtpu: 0.0.40
codegen_flags: <defaults>
</compile_context>

<pallas_src>
import numpy as np
import jax
import jax.numpy as jnp
from jax.experimental import pallas as pl
from jax.experimental.pallas import tpu as pltpu

_EPS = float(np.finfo(np.float32).eps)          # torch.finfo(torch.float32).eps
_INV_LN10 = float(1.0 / np.log(10.0))


def _round_up(a, b):
    return -(-a // b) * b


# ---------------------------------------------------------------------------
# host-side constant builders (numpy, done once per config)
# ---------------------------------------------------------------------------
def _build_window(fl, fn):
    """Periodic Hamming window of length fl, zero-padded (centered) to fn."""
    n = np.arange(fl, dtype=np.float64)
    w = 0.54 - 0.46 * np.cos(2.0 * np.pi * n / fl)
    full = np.zeros(fn, np.float64)
    left = (fn - fl) // 2
    full[left:left + fl] = w
    return full


def _build_filterbank(fn, sr, filter_num):
    """Linear triangular filter bank, (fn//2+1, filter_num) (LFCC.trimf)."""
    n_freq = fn // 2 + 1
    f = sr / 2.0 * np.linspace(0.0, 1.0, n_freq)
    bands = np.linspace(f.min(), f.max(), filter_num + 2)
    fb = np.zeros((n_freq, filter_num), np.float64)
    for i in range(filter_num):
        a, b, c = bands[i], bands[i + 1], bands[i + 2]
        y = np.zeros_like(f)
        if a < b:
            m = (a < f) & (f < b)
            y[m] = (f[m] - a) / (b - a)
        if b < c:
            m = (b < f) & (f < c)
            y[m] = (c - f[m]) / (c - b)
        y[f == b] = 1.0
        fb[:, i] = y
    return fb


def _build_dct(N):
    """DCT-II, norm='ortho' matrix D so that  dct(x) = x @ D  (matches dct())."""
    n = np.arange(N, dtype=np.float64)[:, None]
    k = np.arange(N, dtype=np.float64)[None, :]
    D = np.sqrt(2.0 / N) * np.cos(np.pi * (2.0 * n + 1.0) * k / (2.0 * N))
    D[:, 0] = np.sqrt(1.0 / N)
    return D


# ---------------------------------------------------------------------------
# Pallas kernel: frames -> LFCC coefficients (per row, fully fused)
# ---------------------------------------------------------------------------
def _lfcc_kernel(frames_ref, w1_ref, w2_ref, w3_ref, out_ref):
    # matmul 1 (MXU, bf16 operands / f32 accumulate): windowed one-sided DFT,
    # producing [re | im] packed on the lane axis.
    spec = jnp.dot(frames_ref[...], w1_ref[...],
                   preferred_element_type=jnp.float32)
    fp = w2_ref.shape[0]                         # lane offset of imag half (multiple of 128)
    re = spec[:, :fp]
    im = spec[:, fp:]
    power = re * re + im * im                    # f32 VPU; halves matmul-2's K vs [FB;FB]
    # matmul 2: linear filter bank (bf16 operands / f32 accumulate)
    fb = jnp.dot(power.astype(jnp.bfloat16), w2_ref[...],
                 preferred_element_type=jnp.float32)
    # natural log on the EUP (f32); the 1/ln(10) of log10 is pre-folded into W3.
    logfb = jnp.log(fb + _EPS)
    # matmul 3: DCT-II (ortho) truncated to num_ceps, zero-padded to 128 lanes.
    out_ref[...] = jnp.dot(logfb.astype(jnp.bfloat16), w3_ref[...],
                           preferred_element_type=jnp.float32)


def _delta_jnp(x):
    """LFCC.delta: replicate-pad time by 1 each side, out[t] = x[t+1] - x[t-1]."""
    xp = jnp.concatenate([x[:, :1], x, x[:, -1:]], axis=1)
    return xp[:, 2:] - xp[:, :-2]


# ---------------------------------------------------------------------------
# factory: builds the constant matrices and returns a jitted forward fn
# ---------------------------------------------------------------------------
def make_lfcc_pad(fl, fs, fn, sr, filter_num, num_ceps, max_len, tile_r=None):
    n_freq = fn // 2 + 1
    Fp = _round_up(n_freq, 128)            # padded freq lanes per (cos|sin) half
    FNp = _round_up(filter_num, 128)       # padded filter-bank lanes
    CEPp = _round_up(num_ceps, 128)        # padded cepstral lanes (lane-dense out)

    # Hamming window folded into the DFT basis: dot(f*w, C) == dot(f, diag(w)@C)
    win = _build_window(fl, fn)
    nn = np.arange(fn, dtype=np.float64)[:, None]
    kk = np.arange(n_freq, dtype=np.float64)[None, :]
    ang = 2.0 * np.pi * nn * kk / fn
    W1 = np.zeros((fn, 2 * Fp), np.float32)
    W1[:, :n_freq] = (win[:, None] * np.cos(ang)).astype(np.float32)
    W1[:, Fp:Fp + n_freq] = (-win[:, None] * np.sin(ang)).astype(np.float32)

    FB = _build_filterbank(fn, sr, filter_num).astype(np.float32)
    W2 = np.zeros((Fp, FNp), np.float32)
    W2[:n_freq, :filter_num] = FB

    # 1/ln(10) folded here; rows >= filter_num stay zero so the log(eps) of the
    # unused filter-bank lanes never reaches the output.
    D = (_build_dct(filter_num)[:, :num_ceps] * _INV_LN10).astype(np.float32)
    W3 = np.zeros((FNp, CEPp), np.float32)
    W3[:filter_num, :num_ceps] = D

    # bf16 MXU operands (f32 accumulation in-kernel).
    W1j = jnp.asarray(W1, dtype=jnp.bfloat16)
    W2j = jnp.asarray(W2, dtype=jnp.bfloat16)
    W3j = jnp.asarray(W3, dtype=jnp.bfloat16)

    def forward(x):
        # LFCC.forward with compress=True: squeeze the channel dim
        if x.ndim == 3 and x.shape[1] == 1:
            x = x[:, 0, :]
        x = x.astype(jnp.float32)
        B, T = x.shape

        # torch.stft(center=True, pad_mode='constant') framing + skip
        # (keep the last T//fs frames, matching sp_amp[:, -(T//fs):, :]).
        pad = fn // 2
        n_total = 1 + (T + 2 * pad - fn) // fs
        keep = T // fs
        start = n_total - keep

        if fn % fs == 0:
            # hop-aligned framing via reshape/slice/concat views (no XLA gather)
            nb = fn // fs
            Lp = _round_up(T + 2 * pad, fs)
            xp = jnp.pad(x, ((0, 0), (pad, Lp - T - pad)))
            v = xp.reshape(B, Lp // fs, fs)
            frames = jnp.concatenate(
                [v[:, start + j: start + j + keep, :] for j in range(nb)],
                axis=-1)                                   # (B, keep, fn)
            frames = frames.reshape(B * keep, fn)
        else:
            xp = jnp.pad(x, ((0, 0), (pad, pad)))
            idx = (start + np.arange(keep))[:, None] * fs + np.arange(fn)[None, :]
            frames = xp[:, idx].reshape(B * keep, fn)
        # TODO(synk): assemble frames fully in-kernel from the contiguous audio
        # (memory_space=pl.ANY + pltpu.make_async_copy of overlapping windows) to
        # remove the fn/fs-times oversampled frame slab from HBM entirely.

        frames = frames.astype(jnp.bfloat16)   # halves the frame-slab HBM read

        R = B * keep
        R8 = _round_up(R, 8)
        if tile_r is not None:
            tr = max(8, _round_up(tile_r, 8))
        else:
            tr = min(1024, R8)
            # cap so the row grid has >= 2 steps -> both v7x TensorCores get work
            tr = min(tr, max(8, _round_up((R8 + 1) // 2, 8)))
        R_pad = _round_up(R, tr)
        frames = jnp.pad(frames, ((0, R_pad - R), (0, 0)))

        # TODO(synk): single-buffer the constant weight inputs
        # (pipeline_mode=pl.Buffered(1)) once validated on the target jax version.
        lfcc_pad = pl.pallas_call(
            _lfcc_kernel,
            out_shape=jax.ShapeDtypeStruct((R_pad, CEPp), jnp.float32),
            grid=(R_pad // tr,),
            in_specs=[
                pl.BlockSpec((tr, fn), lambda i: (i, 0)),
                pl.BlockSpec((fn, 2 * Fp), lambda i: (0, 0)),
                pl.BlockSpec((Fp, FNp), lambda i: (0, 0)),
                pl.BlockSpec((FNp, CEPp), lambda i: (0, 0)),
            ],
            out_specs=pl.BlockSpec((tr, CEPp), lambda i: (i, 0)),
            compiler_params=pltpu.CompilerParams(
                dimension_semantics=("parallel",)),
        )(frames, W1j, W2j, W3j)

        lfcc = lfcc_pad[:R, :num_ceps].reshape(B, keep, num_ceps)

        # deltas + concat (unnormalized x[t+1]-x[t-1], as in LFCC.delta)
        d1 = _delta_jnp(lfcc)
        d2 = _delta_jnp(d1)
        feat = jnp.concatenate([lfcc, d1, d2], axis=-1)        # (B, keep, 3*ceps)

        # Pad: repeat along time to >= max_len, truncate
        reps = max_len // keep + 1
        feat = jnp.tile(feat, (1, reps, 1))[:, :max_len]       # (B, max_len, 3*ceps)

        # LFCC_Pad: permute(0,2,1).unsqueeze(1)
        return jnp.transpose(feat, (0, 2, 1))[:, None]         # (B, 1, 3*ceps, max_len)

    return jax.jit(forward)


# ---------------------------------------------------------------------------
# pure numpy reference (f64, np.fft.rfft -> independent of the kernel path)
# ---------------------------------------------------------------------------
def _reference_numpy(x, fl, fs, fn, sr, filter_num, num_ceps, max_len):
    x = np.asarray(x, np.float64)
    if x.ndim == 3 and x.shape[1] == 1:
        x = x[:, 0]
    B, T = x.shape
    pad = fn // 2
    xp = np.pad(x, ((0, 0), (pad, pad)))
    n_total = 1 + (T + 2 * pad - fn) // fs
    keep = T // fs
    start = n_total - keep
    idx = (start + np.arange(keep))[:, None] * fs + np.arange(fn)[None, :]
    frames = xp[:, idx]
    win = _build_window(fl, fn)
    X = np.fft.rfft(frames * win, axis=-1)
    sp = np.abs(X) ** 2
    FB = _build_filterbank(fn, sr, filter_num)
    fb = np.log10(sp @ FB + _EPS)
    D = _build_dct(filter_num)[:, :num_ceps]
    lfcc = fb @ D

    def delta(a):
        ap = np.concatenate([a[:, :1], a, a[:, -1:]], axis=1)
        return ap[:, 2:] - ap[:, :-2]

    d1 = delta(lfcc)
    d2 = delta(d1)
    feat = np.concatenate([lfcc, d1, d2], axis=-1)
    reps = max_len // keep + 1
    feat = np.tile(feat, (1, reps, 1))[:, :max_len]
    return np.transpose(feat, (0, 2, 1))[:, None].astype(np.float32)


if __name__ == "__main__":
    # small shapes consistent with the module's defaults (compress, skip,
    # with_energy=False, with_emphasis=False, is_mask=False)
    fl, fs, fn, sr = 128, 64, 128, 16000
    filter_num, num_ceps, max_len = 20, 20, 32
    B, T = 2, 1024

    key = jax.random.PRNGKey(0)
    x = jax.random.normal(key, (B, 1, T), dtype=jnp.float32)

    # default tiling: tr = min(1024, rows) capped to keep >= 2 grid steps
    forward = make_lfcc_pad(fl, fs, fn, sr, filter_num, num_ceps, max_len)
    out = jax.block_until_ready(forward(x))

    assert out.shape == (B, 1, 3 * num_ceps, max_len), out.shape
    out_np = np.asarray(out)
    assert np.all(np.isfinite(out_np))

    ref = _reference_numpy(np.asarray(x), fl, fs, fn, sr,
                           filter_num, num_ceps, max_len)
    # bf16 MXU operands (f32 accumulation, f32 log, f32 output): small absolute
    # slack for the delta / delta-delta of the large c0 coefficient.
    np.testing.assert_allclose(out_np, ref, rtol=5e-2, atol=1e-1)

    print("KERNEL_OK")
</pallas_src>

<mosaic_0001>
module attributes {stable_mosaic.version = 11 : i64} {
  func.func @_lfcc_kernel(%arg0: i32, %arg1: memref<16x128xbf16, #tpu.memory_space<vmem>>, %arg2: memref<128x256xbf16, #tpu.memory_space<vmem>>, %arg3: memref<128x128xbf16, #tpu.memory_space<vmem>>, %arg4: memref<128x128xbf16, #tpu.memory_space<vmem>>, %arg5: memref<16x128xf32, #tpu.memory_space<vmem>>) attributes {dimension_semantics = [#tpu.dimension_semantics<parallel>], iteration_bounds = array<i64: 2>, scalar_prefetch = 0 : i64, scratch_operands = 0 : i64, tpu.core_type = #tpu.core_type<tc>, window_params = [{transform_indices = @transform_0, window_bounds = array<i64: 16, 128>}, {pipeline_mode = #tpu.pipeline_mode<synchronous>, transform_indices = @transform_1, window_bounds = array<i64: 128, 256>}, {pipeline_mode = #tpu.pipeline_mode<synchronous>, transform_indices = @transform_2, window_bounds = array<i64: 128, 128>}, {pipeline_mode = #tpu.pipeline_mode<synchronous>, transform_indices = @transform_3, window_bounds = array<i64: 128, 128>}, {transform_indices = @transform_4, window_bounds = array<i64: 16, 128>}]} {
    %c0 = arith.constant 0 : index
    %c0_0 = arith.constant 0 : index
    %0 = vector.load %arg1[%c0, %c0_0] : memref<16x128xbf16, #tpu.memory_space<vmem>>, vector<16x128xbf16>
    %c0_1 = arith.constant 0 : index
    %c0_2 = arith.constant 0 : index
    %1 = vector.load %arg2[%c0_1, %c0_2] : memref<128x256xbf16, #tpu.memory_space<vmem>>, vector<128x256xbf16>
    %cst = arith.constant dense<0.000000e+00> : vector<16x256xf32>
    %2 = tpu.matmul %0, %1, %cst {dimension_numbers = #tpu.dot_dimension_numbers<[1], [0], [0], [1], [0, 0, 1, 1], [], []>} : vector<16x128xbf16>, vector<128x256xbf16>, vector<16x256xf32> -> vector<16x256xf32>
    %3 = vector.extract_strided_slice %2 {offsets = [0, 0], sizes = [16, 128], strides = [1, 1]} : vector<16x256xf32> to vector<16x128xf32>
    %4 = vector.extract_strided_slice %2 {offsets = [0, 128], sizes = [16, 128], strides = [1, 1]} : vector<16x256xf32> to vector<16x128xf32>
    %5 = arith.mulf %3, %3 : vector<16x128xf32>
    %6 = arith.mulf %4, %4 : vector<16x128xf32>
    %7 = arith.addf %5, %6 : vector<16x128xf32>
    %8 = arith.truncf %7 : vector<16x128xf32> to vector<16x128xbf16>
    %c0_3 = arith.constant 0 : index
    %c0_4 = arith.constant 0 : index
    %9 = vector.load %arg3[%c0_3, %c0_4] : memref<128x128xbf16, #tpu.memory_space<vmem>>, vector<128x128xbf16>
    %cst_5 = arith.constant dense<0.000000e+00> : vector<16x128xf32>
    %10 = tpu.matmul %8, %9, %cst_5 {dimension_numbers = #tpu.dot_dimension_numbers<[1], [0], [0], [1], [0, 0, 1, 1], [], []>} : vector<16x128xbf16>, vector<128x128xbf16>, vector<16x128xf32> -> vector<16x128xf32>
    %cst_6 = arith.constant 1.1920929E-7 : f32
    %11 = vector.broadcast %cst_6 : f32 to vector<16x128xf32>
    %12 = arith.addf %10, %11 : vector<16x128xf32>
    %13 = math.log %12 : vector<16x128xf32>
    %14 = arith.truncf %13 : vector<16x128xf32> to vector<16x128xbf16>
    %c0_7 = arith.constant 0 : index
    %c0_8 = arith.constant 0 : index
    %15 = vector.load %arg4[%c0_7, %c0_8] : memref<128x128xbf16, #tpu.memory_space<vmem>>, vector<128x128xbf16>
    %cst_9 = arith.constant dense<0.000000e+00> : vector<16x128xf32>
    %16 = tpu.matmul %14, %15, %cst_9 {dimension_numbers = #tpu.dot_dimension_numbers<[1], [0], [0], [1], [0, 0, 1, 1], [], []>} : vector<16x128xbf16>, vector<128x128xbf16>, vector<16x128xf32> -> vector<16x128xf32>
    %c0_10 = arith.constant 0 : index
    %c0_11 = arith.constant 0 : index
    %17 = vector.load %arg5[%c0_10, %c0_11] : memref<16x128xf32, #tpu.memory_space<vmem>>, vector<16x128xf32>
    tpu.vector_store %arg5[%c0_10, %c0_11], %16 {strides = array<i32>} : memref<16x128xf32, #tpu.memory_space<vmem>>, vector<16x128xf32>,
    return
  }
  func.func @transform_0(%arg0: i32) -> (i32, i32) {
    %c0_i32 = arith.constant 0 : i32
    %c0_i32_0 = arith.constant 0 : i32
    return %arg0, %c0_i32 : i32, i32
  }
  func.func @transform_1(%arg0: i32) -> (i32, i32) {
    %c0_i32 = arith.constant 0 : i32
    %c0_i32_0 = arith.constant 0 : i32
    %c0_i32_1 = arith.constant 0 : i32
    return %c0_i32, %c0_i32_0 : i32, i32
  }
  func.func @transform_2(%arg0: i32) -> (i32, i32) {
    %c0_i32 = arith.constant 0 : i32
    %c0_i32_0 = arith.constant 0 : i32
    %c0_i32_1 = arith.constant 0 : i32
    return %c0_i32, %c0_i32_0 : i32, i32
  }
  func.func @transform_3(%arg0: i32) -> (i32, i32) {
    %c0_i32 = arith.constant 0 : i32
    %c0_i32_0 = arith.constant 0 : i32
    %c0_i32_1 = arith.constant 0 : i32
    return %c0_i32, %c0_i32_0 : i32, i32
  }
  func.func @transform_4(%arg0: i32) -> (i32, i32) {
    %c0_i32 = arith.constant 0 : i32
    %c0_i32_0 = arith.constant 0 : i32
    return %arg0, %c0_i32 : i32, i32
  }
}

</mosaic_0001>

<llo_original>
// kernel: forward.1
$region0: #{forward.1}
  #allocation0 [shape = 'u32[]', space=smem, size = 0x4, offset = 0x4, fixed_abs, tag = 'smem constant byte address 0x4 - core index']
  #allocation1 [shape = 'u32[144,128]{1,0:T(1,128)}', space=vmem, size = 0x12000, scoped, tag = 'internal scratch']
  %s0 = inlined_call_operand.vmem [shape: bf16[32,128], index: 0, kind: input, shape index: {}]
  %s1 = inlined_call_operand.vmem [shape: bf16[128,256], index: 1, kind: input, shape index: {}]
  %s2 = inlined_call_operand.hbm [shape: bf16[128,128], index: 2, kind: input, shape index: {}]
  %s3 = inlined_call_operand.vmem [shape: bf16[128,128], index: 3, kind: input, shape index: {}]
  %s4 = inlined_call_operand.vmem [shape: f32[32,128], index: 4, kind: output, shape index: {}]
  %s5 = sld [smem:[#allocation0]]
  $region53: #{forward.1} parent=0
    _
  %s7 = ssub.s32 1, %s5
  %s8 = scalar_select 0, %s7, %s5
  $region1: #{forward.1} parent=0
    #allocation2 [shape = 'u8[32768]{0}', space=vmem, size = 0x8000, scoped, tag = 'input window, operand 2, single buffered']
    #allocation3 [shape = 's32[2]{0}', space=sflag, size = 0x8, scoped, tag = 'scoped memory for forward.1']
    %9 = vsyncpa [#allocation3], 0
    loop: start=0, step=1, limit=4
    $region2: #{forward.1} parent=1 // loop_pre_header
      _
    $region3: #{forward.1} parent=1 // loop_header
      %s11 = sphi 0, %s15
      %p12 = scmp.ge.s32.totalorder %s11, 4
      %s21 = sphi 0, %s23
      %s24 = sphi 0, %s21
      %s25 = sphi 0, %s24
      %s41 = sphi 0, %s25
      %s45 = sphi 0, %s45
      %s47 = sphi 0, %s45
      %s48 = sphi 0, %s47
      %s62 = sphi 0, %s48
      %s66 = sphi 0, %s66
      %s68 = sphi 0, %s66
      %s69 = sphi 0, %s68
      %s83 = sphi 0, %s69
      %s87 = sphi 0, %s87
      %s89 = sphi 0, %s87
      %s90 = sphi 0, %s89
      %s104 = sphi 0, %s90
      %s110 = sphi 0, %s112
      %s113 = sphi 0, %s110
      %s114 = sphi 0, %s113
      %s130 = sphi 0, %s114
    $region4: #{forward.1} parent=1 // loop_header_branch
      %14 = sbr.rel (%p12) target = $region8
    $region5: #{forward.1} parent=1 // loop_body
      %s16 = ssub.s32 %s11, 1
      %s17 = ssub.s32 %s11, 2
      %s18 = sadd.s32 %s11, 1
      %s19 = ssub.s32 %s11, %s18
      %p20 = scmp.eq.s32.totalorder %s19, 0
      %s22 = sadd.s32 %s21, 1
      %s23 = scalar_select %p20, %s21, %s22
      %p26 = pneg %p20
      %p27 = scmp.eq.s32.totalorder %s11, 1
      %p28 = por %p26, %p27
      %p29 = scmp.ne.s32.totalorder %s21, %s24
      %p30 = scmp.eq.s32.totalorder %s11, 0
      %p31 = por %p29, %p30
      %p32 = scmp.ne.s32.totalorder %s21, %s24
      %p33 = scmp.eq.s32.totalorder %s16, 1
      %p34 = por %p32, %p33
      %p35 = scmp.ne.s32.totalorder %s24, %s25
      %p36 = scmp.eq.s32.totalorder %s16, 0
      %p37 = por %p35, %p36
      %p38 = scmp.ne.s32.totalorder %s24, %s25
      %p39 = scmp.eq.s32.totalorder %s17, 1
      %p40 = por %p38, %p39
      %p42 = scmp.ne.s32.totalorder %s25, %s41
      %p43 = scmp.eq.s32.totalorder %s17, 0
      %p44 = por %p42, %p43
      %s46 = sadd.s32 %s45, 1
      %p49 = scmp.eq.s32.totalorder %s11, 1
      %p50 = scmp.ne.s32.totalorder %s45, %s47
      %p51 = scmp.eq.s32.totalorder %s11, 0
      %p52 = por %p50, %p51
      %p53 = scmp.ne.s32.totalorder %s45, %s47
      %p54 = scmp.eq.s32.totalorder %s16, 1
      %p55 = por %p53, %p54
      %p56 = scmp.ne.s32.totalorder %s47, %s48
      %p57 = scmp.eq.s32.totalorder %s16, 0
      %p58 = por %p56, %p57
      %p59 = scmp.ne.s32.totalorder %s47, %s48
      %p60 = scmp.eq.s32.totalorder %s17, 1
      %p61 = por %p59, %p60
      %p63 = scmp.ne.s32.totalorder %s48, %s62
      %p64 = scmp.eq.s32.totalorder %s17, 0
      %p65 = por %p63, %p64
      %s67 = sadd.s32 %s66, 1
      %p70 = scmp.eq.s32.totalorder %s11, 1
      %p71 = scmp.ne.s32.totalorder %s66, %s68
      %p72 = scmp.eq.s32.totalorder %s11, 0
      %p73 = por %p71, %p72
      %p74 = scmp.ne.s32.totalorder %s66, %s68
      %p75 = scmp.eq.s32.totalorder %s16, 1
      %p76 = por %p74, %p75
      %p77 = scmp.ne.s32.totalorder %s68, %s69
      %p78 = scmp.eq.s32.totalorder %s16, 0
      %p79 = por %p77, %p78
      %p80 = scmp.ne.s32.totalorder %s68, %s69
      %p81 = scmp.eq.s32.totalorder %s17, 1
      %p82 = por %p80, %p81
      %p84 = scmp.ne.s32.totalorder %s69, %s83
      %p85 = scmp.eq.s32.totalorder %s17, 0
      %p86 = por %p84, %p85
      %s88 = sadd.s32 %s87, 1
      %p91 = scmp.eq.s32.totalorder %s11, 1
      %p92 = scmp.ne.s32.totalorder %s87, %s89
      %p93 = scmp.eq.s32.totalorder %s11, 0
      %p94 = por %p92, %p93
      %p95 = scmp.ne.s32.totalorder %s87, %s89
      %p96 = scmp.eq.s32.totalorder %s16, 1
      %p97 = por %p95, %p96
      %p98 = scmp.ne.s32.totalorder %s89, %s90
      %p99 = scmp.eq.s32.totalorder %s16, 0
      %p100 = por %p98, %p99
      %p101 = scmp.ne.s32.totalorder %s89, %s90
      %p102 = scmp.eq.s32.totalorder %s17, 1
      %p103 = por %p101, %p102
      %p105 = scmp.ne.s32.totalorder %s90, %s104
      %p106 = scmp.eq.s32.totalorder %s17, 0
      %p107 = por %p105, %p106
      %s108 = ssub.s32 %s11, %s18
      %p109 = scmp.eq.s32.totalorder %s108, 0
      %s111 = sadd.s32 %s110, 1
      %s112 = scalar_select %p109, %s110, %s111
      %p115 = pneg %p109
      %p116 = scmp.eq.s32.totalorder %s11, 1
      %p117 = por %p115, %p116
      %p118 = scmp.ne.s32.totalorder %s110, %s113
      %p119 = scmp.eq.s32.totalorder %s11, 0
      %p120 = por %p118, %p119
      %p121 = scmp.ne.s32.totalorder %s110, %s113
      %p122 = scmp.eq.s32.totalorder %s16, 1
      %p123 = por %p121, %p122
      %p124 = scmp.ne.s32.totalorder %s113, %s114
      %p125 = scmp.eq.s32.totalorder %s16, 0
      %p126 = por %p124, %p125
      %p127 = scmp.ne.s32.totalorder %s113, %s114
      %p128 = scmp.eq.s32.totalorder %s17, 1
      %p129 = por %p127, %p128
      %p131 = scmp.ne.s32.totalorder %s114, %s130
      %p132 = scmp.eq.s32.totalorder %s17, 0
      %p133 = por %p131, %p132
      %p134 = scmp.le.s32.totalorder 1, %s11
      %p135 = scmp.lt.s32.totalorder %s11, 3
      %p136 = pnand %p134, %p135
      %p137 = pneg %p136
      // Predicated region
      $region9: #{forward.1} parent=5 // pred_check
        _
      $region10: #{forward.1} parent=5 // pred_check_branch
        %139 = sbr.rel (%p136) target = $region12
      $region11: #{forward.1} parent=5 // pred_region
        %s140 = ssub.s32 %s11, 1
        // Predicated region
        $region13: #{forward.1} parent=11 // pred_check
          %p141 = pneg %p58
        $region14: #{forward.1} parent=11 // pred_check_branch
          %143 = sbr.rel (%p141) target = $region16
        $region15: #{forward.1} parent=11 // pred_region
          _
        $region16: #{forward.1} parent=11 // pred_fallthru
          _
        // Predicated region
        $region17: #{forward.1} parent=11 // pred_check
          %p144 = pneg %p79
        $region18: #{forward.1} parent=11 // pred_check_branch
          %146 = sbr.rel (%p144) target = $region20
        $region19: #{forward.1} parent=11 // pred_region
          %s148 = ssub.s32 1024, 1024
          %149 = vsyncadd [#allocation3], %s148
          %s150 = sshll.u32 [#allocation2], 4
          %s151 = int_to_ptr.vmem [resolvable:$true] %s150
          %156 = dma.hbm_to_vmem [thread:$0]  %s2, 1024, %s151, [#allocation3], 64, 64, 4
        $region20: #{forward.1} parent=11 // pred_fallthru
          _
        // Predicated region
        $region21: #{forward.1} parent=11 // pred_check
          %p157 = pneg %p100
        $region22: #{forward.1} parent=11 // pred_check_branch
          %159 = sbr.rel (%p157) target = $region24
        $region23: #{forward.1} parent=11 // pred_region
          _
        $region24: #{forward.1} parent=11 // pred_fallthru
          _
      $region12: #{forward.1} parent=5 // pred_fallthru
        _
      %p160 = scmp.lt.s32.totalorder %s11, 2
      // Predicated region
      $region25: #{forward.1} parent=5 // pred_check
        %p161 = pneg %p160
      $region26: #{forward.1} parent=5 // pred_check_branch
        %163 = sbr.rel (%p161) target = $region28
      $region27: #{forward.1} parent=5 // pred_region
        // Predicated region
        $region29: #{forward.1} parent=27 // pred_check
          %p164 = pneg %p31
        $region30: #{forward.1} parent=27 // pred_check_branch
          %166 = sbr.rel (%p164) target = $region32
        $region31: #{forward.1} parent=27 // pred_region
          %s167 = smul.u32 2, %s11
          %p168 = scmp.lt.s32.totalorder %s167, 3
          %s169 = scalar_select %p168, %s167, 3
          %s170 = smul.addr %s169, 4
          %s171 = scalar_lea.vmem %s0, %s170
          %s172 = smul.u32 2, %s11
        $region32: #{forward.1} parent=27 // pred_fallthru
          _
      $region28: #{forward.1} parent=5 // pred_fallthru
        _
      %p173 = scmp.le.s32.totalorder 1, %s11
      %p174 = scmp.lt.s32.totalorder %s11, 3
      %p175 = pnand %p173, %p174
      %p176 = pneg %p175
      // Predicated region
      $region33: #{forward.1} parent=5 // pred_check
        _
      $region34: #{forward.1} parent=5 // pred_check_branch
        %178 = sbr.rel (%p175) target = $region36
      $region35: #{forward.1} parent=5 // pred_region
        %s179 = ssub.s32 %s11, 1
        // Predicated region
        $region37: #{forward.1} parent=35 // pred_check
          %p180 = pneg %p79
        $region38: #{forward.1} parent=35 // pred_check_branch
          %182 = sbr.rel (%p180) target = $region40
        $region39: #{forward.1} parent=35 // pred_region
          %183 = dma.done [#allocation3], 1024
        $region40: #{forward.1} parent=35 // pred_fallthru
          _
        %s184 = smul.u32 2, %s16
        %p185 = scmp.lt.s32.totalorder %s184, 3
        %s186 = scalar_select %p185, %s184, 3
        %s187 = smul.addr %s186, 4
        %s188 = scalar_lea.vmem %s0, %s187
        %p189 = pneg %p37
        %p190 = pneg %p34
        %p191 = pneg %p58
        %p192 = pneg %p55
        %p193 = pneg %p79
        %p194 = pneg %p76
        %p195 = pneg %p100
        %p196 = pneg %p97
        %p197 = pneg %p126
        %p198 = pneg %p123
        %s199 = smul.u32 2, %s16
        %p200 = scmp.lt.s32.totalorder %s199, 3
        %s201 = scalar_select %p200, %s199, 3
        %s202 = smul.addr %s201, 8
        %s203 = scalar_lea.vmem %s4, %s202
        %s204 = smul.u32 2, %s16
        %p205 = scmp.lt.s32.totalorder %s204, 3
        %s206 = scalar_select %p205, %s204, 3
        %s207 = smul.addr %s206, 4
        %s208 = scalar_lea.vmem %s0, %s207
        %s209 = smul.u32 2, %s16
        %s210 = smul.u32 2, %s16
        %p211 = scmp.lt.s32.totalorder %s210, 3
        %s212 = scalar_select %p211, %s210, 3
        %s213 = smul.addr %s212, 8
        %s214 = scalar_lea.vmem %s4, %s213
        %s215 = smul.u32 2, %s16
        %v217 = vld [vmem:[%s208] sm:$0xf]
        %v218 = vld [vmem:[%s208 + $0x4] sm:$0xf]
        %v219 = vld [vmem:[%s1] sm:$0xff]
        %v220 = vld [vmem:[%s1 + $0x8] sm:$0xff]
        %v221 = vld [vmem:[%s1 + $0x10] sm:$0xff]
        %v222 = vld [vmem:[%s1 + $0x18] sm:$0xff]
        %v223 = vld [vmem:[%s1 + $0x20] sm:$0xff]
        %v224 = vld [vmem:[%s1 + $0x28] sm:$0xff]
        %v225 = vld [vmem:[%s1 + $0x30] sm:$0xff]
        %v226 = vld [vmem:[%s1 + $0x38] sm:$0xff]
        %v227 = vld [vmem:[%s1 + $0x40] sm:$0xff]
        %v228 = vld [vmem:[%s1 + $0x48] sm:$0xff]
        %v229 = vld [vmem:[%s1 + $0x50] sm:$0xff]
        %v230 = vld [vmem:[%s1 + $0x58] sm:$0xff]
        %v231 = vld [vmem:[%s1 + $0x60] sm:$0xff]
        %v232 = vld [vmem:[%s1 + $0x68] sm:$0xff]
        %v233 = vld [vmem:[%s1 + $0x70] sm:$0xff]
        %v234 = vld [vmem:[%s1 + $0x78] sm:$0xff]
        %v237 = vunpack.c.l.b16 %v217
        %v238 = vunpack.c.l.b16 %v218
        %v239 = vpack.c.b16 %v238, %v237
        %v257 = vunpack.c.l.b16 %v219
        %v258 = vunpack.c.h.b16 %v219
        %v259 = vunpack.c.l.b16 %v220
        %v260 = vunpack.c.h.b16 %v220
        %v261 = vunpack.c.l.b16 %v221
        %v262 = vunpack.c.h.b16 %v221
        %v263 = vunpack.c.l.b16 %v222
        %v264 = vunpack.c.h.b16 %v222
        %v265 = vunpack.c.l.b16 %v223
        %v266 = vunpack.c.h.b16 %v223
        %v267 = vunpack.c.l.b16 %v224
        %v268 = vunpack.c.h.b16 %v224
        %v269 = vunpack.c.l.b16 %v225
        %v270 = vunpack.c.h.b16 %v225
        %v271 = vunpack.c.l.b16 %v226
        %v272 = vunpack.c.h.b16 %v226
        %v273 = vunpack.c.l.b16 %v227
        %v274 = vunpack.c.h.b16 %v227
        %v275 = vunpack.c.l.b16 %v228
        %v276 = vunpack.c.h.b16 %v228
        %v277 = vunpack.c.l.b16 %v229
        %v278 = vunpack.c.h.b16 %v229
        %v279 = vunpack.c.l.b16 %v230
        %v280 = vunpack.c.h.b16 %v230
        %v281 = vunpack.c.l.b16 %v231
        %v282 = vunpack.c.h.b16 %v231
        %v283 = vunpack.c.l.b16 %v232
        %v284 = vunpack.c.h.b16 %v232
        %v285 = vunpack.c.l.b16 %v233
        %v286 = vunpack.c.h.b16 %v233
        %v287 = vunpack.c.l.b16 %v234
        %v288 = vunpack.c.h.b16 %v234
        %v289 = vpack.c.b16 %v259, %v257
        %v290 = vpack.c.b16 %v260, %v258
        %v291 = vpack.c.b16 %v263, %v261
        %v292 = vpack.c.b16 %v264, %v262
        %v293 = vpack.c.b16 %v267, %v265
        %v294 = vpack.c.b16 %v268, %v266
        %v295 = vpack.c.b16 %v271, %v269
        %v296 = vpack.c.b16 %v272, %v270
        %v297 = vpack.c.b16 %v275, %v273
        %v298 = vpack.c.b16 %v276, %v274
        %v299 = vpack.c.b16 %v279, %v277
        %v300 = vpack.c.b16 %v280, %v278
        %v301 = vpack.c.b16 %v283, %v281
        %v302 = vpack.c.b16 %v284, %v282
        %v303 = vpack.c.b16 %v287, %v285
        %v304 = vpack.c.b16 %v288, %v286
        %321 = vmatprep.subr.bf16.mxu0 %v304
        %322 = vmatpush1.bf16.msra.mxu0 %v303
        %323 = vmatprep.subr.bf16.mxu0 %v302
        %324 = vmatpush1.bf16.msra.mxu0 %v301
        %325 = vmatprep.subr.bf16.mxu0 %v300
        %326 = vmatpush1.bf16.msra.mxu0 %v299
        %327 = vmatprep.subr.bf16.mxu0 %v298
        %328 = vmatpush1.bf16.msra.mxu0 %v297
        %329 = vmatprep.subr.bf16.mxu0 %v296
        %330 = vmatpush1.bf16.msra.mxu0 %v295
        %331 = vmatprep.subr.bf16.mxu0 %v294
        %332 = vmatpush1.bf16.msra.mxu0 %v293
        %333 = vmatprep.subr.bf16.mxu0 %v292
        %334 = vmatpush1.bf16.msra.mxu0 %v291
        %335 = vmatprep.subr.bf16.mxu0 %v290
        %336 = vmatpush1.bf16.msra.mxu0 %v289
        %337 = vmatprep.subr.bf16.mxu0 0
        %338 = vmatpush2.bf16.msra.mxu0 0
        %339 = vmatprep.subr.bf16.mxu0 0
        %340 = vmatpush2.bf16.msra.mxu0 0
        %341 = vmatprep.subr.bf16.mxu0 0
        %342 = vmatpush2.bf16.msra.mxu0 0
        %343 = vmatprep.subr.bf16.mxu0 0
        %344 = vmatpush2.bf16.msra.mxu0 0
        %345 = vmatprep.subr.bf16.mxu0 0
        %346 = vmatpush2.bf16.msra.mxu0 0
        %347 = vmatprep.subr.bf16.mxu0 0
        %348 = vmatpush2.bf16.msra.mxu0 0
        %349 = vmatprep.subr.bf16.mxu0 0
        %350 = vmatpush2.bf16.msra.mxu0 0
        %351 = vmatprep.subr.bf16.mxu0 0
        %352 = vmatpush2.bf16.msra.mxu0 0
        %353 = vmatprep.mubr.bf16.mxu0 0
        %354 = vmatmul.mubr.bf16.gmra.mxu0 %v239
        %v355 = vpop.f32.mrf.mxu0
        %v356 = vadd.f32 0.0, %v355
        %v357 = vpop.f32.mrf.mxu0
        %v358 = vadd.f32 0.0, %v357
        %v359 = vpop.f32.mrf.mxu0
        %v360 = vadd.f32 0.0, %v359
        %v361 = vpop.f32.mrf.mxu0
        %v362 = vadd.f32 0.0, %v361
        %363 = vdwg.mxu0
        %v364 = vmul.f32 %v356, %v356
        %v365 = vmul.f32 %v360, %v360
        %v366 = vmul.f32 %v358, %v358
        %v367 = vmul.f32 %v362, %v362
        %v368 = vadd.f32 %v364, %v366
        %v369 = vadd.f32 %v365, %v367
        %v370 = vpack.c.bf16 %v369, %v368
        %v371 = vld [vmem:[#allocation2] sm:$0xf]
        %v372 = vld [vmem:[#allocation2 + $0x4] sm:$0xf]
        %v373 = vld [vmem:[#allocation2 + $0x8] sm:$0xf]
        %v374 = vld [vmem:[#allocation2 + $0xc] sm:$0xf]
        %v375 = vld [vmem:[#allocation2 + $0x10] sm:$0xf]
        %v376 = vld [vmem:[#allocation2 + $0x14] sm:$0xf]
        %v377 = vld [vmem:[#allocation2 + $0x18] sm:$0xf]
        %v378 = vld [vmem:[#allocation2 + $0x1c] sm:$0xf]
        %v379 = vld [vmem:[#allocation2 + $0x20] sm:$0xf]
        %v380 = vld [vmem:[#allocation2 + $0x24] sm:$0xf]
        %v381 = vld [vmem:[#allocation2 + $0x28] sm:$0xf]
        %v382 = vld [vmem:[#allocation2 + $0x2c] sm:$0xf]
        %v383 = vld [vmem:[#allocation2 + $0x30] sm:$0xf]
        %v384 = vld [vmem:[#allocation2 + $0x34] sm:$0xf]
        %v385 = vld [vmem:[#allocation2 + $0x38] sm:$0xf]
        %v386 = vld [vmem:[#allocation2 + $0x3c] sm:$0xf]
        %v403 = vunpack.c.l.b16 %v371
        %v404 = vunpack.c.l.b16 %v372
        %v405 = vunpack.c.l.b16 %v373
        %v406 = vunpack.c.l.b16 %v374
        %v407 = vunpack.c.l.b16 %v375
        %v408 = vunpack.c.l.b16 %v376
        %v409 = vunpack.c.l.b16 %v377
        %v410 = vunpack.c.l.b16 %v378
        %v411 = vunpack.c.l.b16 %v379
        %v412 = vunpack.c.l.b16 %v380
        %v413 = vunpack.c.l.b16 %v381
        %v414 = vunpack.c.l.b16 %v382
        %v415 = vunpack.c.l.b16 %v383
        %v416 = vunpack.c.l.b16 %v384
        %v417 = vunpack.c.l.b16 %v385
        %v418 = vunpack.c.l.b16 %v386
        %v419 = vpack.c.b16 %v404, %v403
        %v420 = vpack.c.b16 %v406, %v405
        %v421 = vpack.c.b16 %v408, %v407
        %v422 = vpack.c.b16 %v410, %v409
        %v423 = vpack.c.b16 %v412, %v411
        %v424 = vpack.c.b16 %v414, %v413
        %v425 = vpack.c.b16 %v416, %v415
        %v426 = vpack.c.b16 %v418, %v417
        %435 = vmatprep.subr.bf16.mxu0 0
        %436 = vmatpush1.bf16.msra.mxu0 %v426
        %437 = vmatprep.subr.bf16.mxu0 0
        %438 = vmatpush1.bf16.msra.mxu0 %v425
        %439 = vmatprep.subr.bf16.mxu0 0
        %440 = vmatpush1.bf16.msra.mxu0 %v424
        %441 = vmatprep.subr.bf16.mxu0 0
        %442 = vmatpush1.bf16.msra.mxu0 %v423
        %443 = vmatprep.subr.bf16.mxu0 0
        %444 = vmatpush1.bf16.msra.mxu0 %v422
        %445 = vmatprep.subr.bf16.mxu0 0
        %446 = vmatpush1.bf16.msra.mxu0 %v421
        %447 = vmatprep.subr.bf16.mxu0 0
        %448 = vmatpush1.bf16.msra.mxu0 %v420
        %449 = vmatprep.subr.bf16.mxu0 0
        %450 = vmatpush1.bf16.msra.mxu0 %v419
        %451 = vmatprep.subr.bf16.mxu0 0
        %452 = vmatpush2.bf16.msra.mxu0 0
        %453 = vmatprep.subr.bf16.mxu0 0
        %454 = vmatpush2.bf16.msra.mxu0 0
        %455 = vmatprep.subr.bf16.mxu0 0
        %456 = vmatpush2.bf16.msra.mxu0 0
        %457 = vmatprep.subr.bf16.mxu0 0
        %458 = vmatpush2.bf16.msra.mxu0 0
        %459 = vmatprep.subr.bf16.mxu0 0
        %460 = vmatpush2.bf16.msra.mxu0 0
        %461 = vmatprep.subr.bf16.mxu0 0
        %462 = vmatpush2.bf16.msra.mxu0 0
        %463 = vmatprep.subr.bf16.mxu0 0
        %464 = vmatpush2.bf16.msra.mxu0 0
        %465 = vmatprep.subr.bf16.mxu0 0
        %466 = vmatpush2.bf16.msra.mxu0 0
        %467 = vmatprep.mubr.bf16.mxu0 0
        %468 = vmatmul.mubr.bf16.gmra.mxu0 %v370
        %v469 = vpop.f32.mrf.mxu0
        %v470 = vadd.f32 1.1920929e-07, %v469
        %v471 = vpop.f32.mrf.mxu0
        %v472 = vpop.f32.mrf.mxu0
        %v473 = vadd.f32 1.1920929e-07, %v472
        %v474 = vpop.f32.mrf.mxu0
        %475 = vdwg.mxu0
        %v476 = vlog2.pop %v470
        %v477 = vmul.f32 %v476, 0.6931472
        %v478 = vlog2.pop %v473
        %v479 = vmul.f32 %v478, 0.6931472
        %v480 = vpack.c.bf16 %v479, %v477
        %v481 = vld [vmem:[%s3] sm:$0xf]
        %v482 = vld [vmem:[%s3 + $0x4] sm:$0xf]
        %v483 = vld [vmem:[%s3 + $0x8] sm:$0xf]
        %v484 = vld [vmem:[%s3 + $0xc] sm:$0xf]
        %v485 = vld [vmem:[%s3 + $0x10] sm:$0xf]
        %v486 = vld [vmem:[%s3 + $0x14] sm:$0xf]
        %v487 = vld [vmem:[%s3 + $0x18] sm:$0xf]
        %v488 = vld [vmem:[%s3 + $0x1c] sm:$0xf]
        %v489 = vld [vmem:[%s3 + $0x20] sm:$0xf]
        %v490 = vld [vmem:[%s3 + $0x24] sm:$0xf]
        %v491 = vld [vmem:[%s3 + $0x28] sm:$0xf]
        %v492 = vld [vmem:[%s3 + $0x2c] sm:$0xf]
        %v493 = vld [vmem:[%s3 + $0x30] sm:$0xf]
        %v494 = vld [vmem:[%s3 + $0x34] sm:$0xf]
        %v495 = vld [vmem:[%s3 + $0x38] sm:$0xf]
        %v496 = vld [vmem:[%s3 + $0x3c] sm:$0xf]
        %v513 = vunpack.c.l.b16 %v481
        %v514 = vunpack.c.l.b16 %v482
        %v515 = vunpack.c.l.b16 %v483
        %v516 = vunpack.c.l.b16 %v484
        %v517 = vunpack.c.l.b16 %v485
        %v518 = vunpack.c.l.b16 %v486
        %v519 = vunpack.c.l.b16 %v487
        %v520 = vunpack.c.l.b16 %v488
        %v521 = vunpack.c.l.b16 %v489
        %v522 = vunpack.c.l.b16 %v490
        %v523 = vunpack.c.l.b16 %v491
        %v524 = vunpack.c.l.b16 %v492
        %v525 = vunpack.c.l.b16 %v493
        %v526 = vunpack.c.l.b16 %v494
        %v527 = vunpack.c.l.b16 %v495
        %v528 = vunpack.c.l.b16 %v496
        %v529 = vpack.c.b16 %v514, %v513
        %v530 = vpack.c.b16 %v516, %v515
        %v531 = vpack.c.b16 %v518, %v517
        %v532 = vpack.c.b16 %v520, %v519
        %v533 = vpack.c.b16 %v522, %v521
        %v534 = vpack.c.b16 %v524, %v523
        %v535 = vpack.c.b16 %v526, %v525
        %v536 = vpack.c.b16 %v528, %v527
        %545 = vmatprep.subr.bf16.mxu0 0
        %546 = vmatpush1.bf16.msra.mxu0 %v536
        %547 = vmatprep.subr.bf16.mxu0 0
        %548 = vmatpush1.bf16.msra.mxu0 %v535
        %549 = vmatprep.subr.bf16.mxu0 0
        %550 = vmatpush1.bf16.msra.mxu0 %v534
        %551 = vmatprep.subr.bf16.mxu0 0
        %552 = vmatpush1.bf16.msra.mxu0 %v533
        %553 = vmatprep.subr.bf16.mxu0 0
        %554 = vmatpush1.bf16.msra.mxu0 %v532
        %555 = vmatprep.subr.bf16.mxu0 0
        %556 = vmatpush1.bf16.msra.mxu0 %v531
        %557 = vmatprep.subr.bf16.mxu0 0
        %558 = vmatpush1.bf16.msra.mxu0 %v530
        %559 = vmatprep.subr.bf16.mxu0 0
        %560 = vmatpush1.bf16.msra.mxu0 %v529
        %561 = vmatprep.subr.bf16.mxu0 0
        %562 = vmatpush2.bf16.msra.mxu0 0
        %563 = vmatprep.subr.bf16.mxu0 0
        %564 = vmatpush2.bf16.msra.mxu0 0
        %565 = vmatprep.subr.bf16.mxu0 0
        %566 = vmatpush2.bf16.msra.mxu0 0
        %567 = vmatprep.subr.bf16.mxu0 0
        %568 = vmatpush2.bf16.msra.mxu0 0
        %569 = vmatprep.subr.bf16.mxu0 0
        %570 = vmatpush2.bf16.msra.mxu0 0
        %571 = vmatprep.subr.bf16.mxu0 0
        %572 = vmatpush2.bf16.msra.mxu0 0
        %573 = vmatprep.subr.bf16.mxu0 0
        %574 = vmatpush2.bf16.msra.mxu0 0
        %575 = vmatprep.subr.bf16.mxu0 0
        %576 = vmatpush2.bf16.msra.mxu0 0
        %577 = vmatprep.mubr.bf16.mxu0 0
        %578 = vmatmul.mubr.bf16.gmra.mxu0 %v480
        %v579 = vpop.f32.mrf.mxu0
        %v580 = vadd.f32 0.0, %v579
        %v581 = vpop.f32.mrf.mxu0
        %v582 = vpop.f32.mrf.mxu0
        %v583 = vadd.f32 0.0, %v582
        %v584 = vpop.f32.mrf.mxu0
        %585 = vdwg.mxu0
        %586 = vst [vmem:[%s214] sm:$0xff] %v580
        %587 = vst [vmem:[%s214 + $0x8] sm:$0xff] %v583
        %s588 = smul.u32 2, %s16
        %p589 = scmp.lt.s32.totalorder %s588, 3
        %s590 = scalar_select %p589, %s588, 3
        %s591 = smul.addr %s590, 8
        %s592 = scalar_lea.vmem %s4, %s591
        // Predicated region
        $region41: #{forward.1} parent=35 // pred_check
          %p593 = pneg %p123
        $region42: #{forward.1} parent=35 // pred_check_branch
          %595 = sbr.rel (%p593) target = $region44
        $region43: #{forward.1} parent=35 // pred_region
          %s596 = smul.u32 2, %s16
        $region44: #{forward.1} parent=35 // pred_fallthru
          _
      $region36: #{forward.1} parent=5 // pred_fallthru
        _
      %p597 = scmp.le.s32.totalorder 2, %s11
      // Predicated region
      $region45: #{forward.1} parent=5 // pred_check
        %p598 = pneg %p597
      $region46: #{forward.1} parent=5 // pred_check_branch
        %600 = sbr.rel (%p598) target = $region48
      $region47: #{forward.1} parent=5 // pred_region
        %s601 = ssub.s32 %s11, 2
        // Predicated region
        $region49: #{forward.1} parent=47 // pred_check
          %p602 = pneg %p129
        $region50: #{forward.1} parent=47 // pred_check_branch
          %604 = sbr.rel (%p602) target = $region52
        $region51: #{forward.1} parent=47 // pred_region
          %s605 = smul.u32 2, %s17
          %p606 = scmp.lt.s32.totalorder %s605, 3
          %s607 = scalar_select %p606, %s605, 3
          %s608 = smul.addr %s607, 8
          %s609 = scalar_lea.vmem %s4, %s608
        $region52: #{forward.1} parent=47 // pred_fallthru
          _
      $region48: #{forward.1} parent=5 // pred_fallthru
        _
    $region6: #{forward.1} parent=1 // loop_footer
      %s15 = sadd.s32 1, %s11
    $region7: #{forward.1} parent=1 // loop_footer_branch
      %10 = sbr.rel target = $region3
    $region8: #{forward.1} parent=1 // loop_exit
      _
    %610 = vsyncpa [#allocation3], 1
    %s611 = scalar_lea.sflag [#allocation3], 1
    %612 = vsyncpa %s611, 1

</llo_original>
